<compile_context>
chip_gen: v7x
topology: tpu7x:2x2x1
jax: 0.10.0
libtpu: 0.0.40
codegen_flags: <defaults>
</compile_context>

<pallas_src>
import jax
import jax.numpy as jnp
from jax.experimental import pallas as pl
from jax.experimental.pallas import tpu as pltpu

_LANES = 128
_SUBLANES = 8


def _mlp_kernel(x_ref, w1_ref, b1_ref, w2_ref, b2_ref, o_ref):
    """x_ref: (in_nb, tbs, 128) VMEM; weights/biases: SMEM; o_ref: (out_nb, tbs, 128)."""
    in_nb, tbs, lanes = x_ref.shape
    hid = w1_ref.shape[1]
    out_nb = w2_ref.shape[1]

    # Per-feature lane-dense planes of the batch tile (each a full (tbs, 128) tile).
    x = [x_ref[c] for c in range(in_nb)]

    # Output accumulators initialised with the fc2 bias (scalar from SMEM).
    q = [jnp.full((tbs, lanes), b2_ref[k], dtype=jnp.float32) for k in range(out_nb)]

    # Statically unrolled VPU MAC chains: scalar weight (SMEM) x lane-dense vreg tile.
    for j in range(hid):
        h = jnp.full((tbs, lanes), b1_ref[j], dtype=jnp.float32)   # fc1 bias init
        for c in range(in_nb):
            h = h + w1_ref[c, j] * x[c]
        h = jnp.maximum(h, 0.0)                                    # ReLU
        for k in range(out_nb):
            q[k] = q[k] + w2_ref[j, k] * h
        # h is dead here -> only in_nb + out_nb + 1 tiles live at a time.

    for k in range(out_nb):
        o_ref[k] = q[k].astype(o_ref.dtype)


def network_forward_t(state_t, w1, b1, w2, b2, *, block_sublanes=512):
    """Preferred layout: state_t is (input_nb, B); returns q_values_t (output_nb, B)."""
    state_t = state_t.astype(jnp.float32)
    w1 = w1.astype(jnp.float32)
    b1 = b1.reshape(-1).astype(jnp.float32)
    w2 = w2.astype(jnp.float32)
    b2 = b2.reshape(-1).astype(jnp.float32)

    in_nb, batch = state_t.shape
    hid = w1.shape[1]
    out_nb = w2.shape[1]

    # Round the batch up to a whole number of (8 sublane x 128 lane) vreg tiles.
    nbp = pl.cdiv(batch, _LANES * _SUBLANES) * _SUBLANES   # lane-rows, multiple of 8
    bp = nbp * _LANES                                      # <= 1023 padded elements
    if bp != batch:
        state_t = jnp.pad(state_t, ((0, 0), (0, bp - batch)))
    x3 = state_t.reshape(in_nb, nbp, _LANES)               # metadata-only reshape

    # Batch tile (in sublane-rows): as big as requested, multiple of 8.
    tbs = max(_SUBLANES, (min(block_sublanes, nbp) // _SUBLANES) * _SUBLANES)
    # v7x has 2 TensorCores: keep >= 2 parallel grid steps when there is enough work.
    if pl.cdiv(nbp, tbs) < 2 and nbp >= 2 * _SUBLANES:
        tbs = max(_SUBLANES, (pl.cdiv(nbp, 2) // _SUBLANES) * _SUBLANES)
    grid_n = pl.cdiv(nbp, tbs)                             # ragged last tile is masked

    out3 = pl.pallas_call(
        _mlp_kernel,
        out_shape=jax.ShapeDtypeStruct((out_nb, nbp, _LANES), jnp.float32),
        grid=(grid_n,),
        in_specs=[
            # Batch-tiled, lane-dense activations stream through the pipeline.
            pl.BlockSpec((in_nb, tbs, _LANES), lambda i: (0, i, 0)),
            # Tiny weights/biases: whole arrays in SMEM, read as scalars, placed once.
            pl.BlockSpec(memory_space=pltpu.MemorySpace.SMEM),   # w1 (in_nb, hid)
            pl.BlockSpec(memory_space=pltpu.MemorySpace.SMEM),   # b1 (hid,)
            pl.BlockSpec(memory_space=pltpu.MemorySpace.SMEM),   # w2 (hid, out_nb)
            pl.BlockSpec(memory_space=pltpu.MemorySpace.SMEM),   # b2 (out_nb,)
        ],
        out_specs=pl.BlockSpec((out_nb, tbs, _LANES), lambda i: (0, i, 0)),
        compiler_params=pltpu.CompilerParams(
            dimension_semantics=("parallel",),      # batch tiles are independent
            vmem_limit_bytes=64 * 1024 * 1024,      # headroom above v5e's 16 MiB default
        ),
    )(x3, w1, b1, w2, b2)

    out_t = out3.reshape(out_nb, bp)
    return out_t[:, :batch] if bp != batch else out_t


def network_forward_pallas(state, w1, b1, w2, b2, *, block_sublanes=512):
    """Torch-layout wrapper. state: (B, input_nb) -> q_values: (B, output_nb)."""
    state_t = jnp.transpose(state.astype(jnp.float32))      # single layout pass
    out_t = network_forward_t(state_t, w1, b1, w2, b2, block_sublanes=block_sublanes)
    return jnp.transpose(out_t)


def _network_forward_xla(state, w1, b1, w2, b2):
    """Fused XLA path for tiny batches (same f32 casting as the Pallas path)."""
    state = state.astype(jnp.float32)
    w1 = w1.astype(jnp.float32)
    b1 = b1.reshape(-1).astype(jnp.float32)
    w2 = w2.astype(jnp.float32)
    b2 = b2.reshape(-1).astype(jnp.float32)
    h = jnp.maximum(state @ w1 + b1, 0.0)
    return h @ w2 + b2


def network_forward(state, w1, b1, w2, b2, *, block_sublanes=512, min_pallas_batch=1024):
    """Dispatch: Pallas kernel for large replay batches, fused XLA otherwise."""
    # TODO(synk): re-benchmark the Pallas-vs-XLA crossover now that the layout is lane-dense.
    if state.shape[0] >= min_pallas_batch:
        return network_forward_pallas(state, w1, b1, w2, b2, block_sublanes=block_sublanes)
    return _network_forward_xla(state, w1, b1, w2, b2)


def init_params(key, input_nb, output_nb, hidden=7):
    """torch.nn.Linear-style U(-1/sqrt(fan_in), 1/sqrt(fan_in)) init.

    Weights stored as (in_features, out_features)."""
    k1, k2, k3, k4 = jax.random.split(key, 4)
    bound1 = 1.0 / jnp.sqrt(input_nb)
    bound2 = 1.0 / jnp.sqrt(hidden)
    w1 = jax.random.uniform(k1, (input_nb, hidden), jnp.float32, -bound1, bound1)
    b1 = jax.random.uniform(k2, (hidden,), jnp.float32, -bound1, bound1)
    w2 = jax.random.uniform(k3, (hidden, output_nb), jnp.float32, -bound2, bound2)
    b2 = jax.random.uniform(k4, (output_nb,), jnp.float32, -bound2, bound2)
    return w1, b1, w2, b2


if __name__ == "__main__":
    key = jax.random.PRNGKey(0)
    k_in, k_in2, k_params = jax.random.split(key, 3)

    # Self-driving-car DQN: input_nb = 5 sensor signals, output_nb = 3 actions.
    input_nb, output_nb = 5, 3
    w1, b1, w2, b2 = init_params(k_params, input_nb, output_nb)

    def ref_fwd(s):
        return jnp.maximum(s @ w1 + b1, 0.0) @ w2 + b2

    # 1) Pallas path: batch not a multiple of 128 -> exercises rounding to the
    #    1024-element vreg tile, the lane-dense layout, and output slicing.
    batch = 300
    state = jax.random.normal(k_in, (batch, input_nb), dtype=jnp.float32)
    q_values = jax.block_until_ready(network_forward_pallas(state, w1, b1, w2, b2))
    assert q_values.shape == (batch, output_nb)
    assert jnp.allclose(q_values, ref_fwd(state), atol=1e-5, rtol=1e-5)

    # 2) Multi-step grid (weights stay SMEM-resident across steps).
    batch2 = 2560
    state2 = jax.random.normal(k_in2, (batch2, input_nb), dtype=jnp.float32)
    q2 = jax.block_until_ready(
        network_forward_pallas(state2, w1, b1, w2, b2, block_sublanes=8))
    assert q2.shape == (batch2, output_nb)
    assert jnp.allclose(q2, ref_fwd(state2), atol=1e-5, rtol=1e-5)

    # 3) Transposed (preferred producer) layout API.
    q_t = jax.block_until_ready(network_forward_t(state.T, w1, b1, w2, b2))
    assert jnp.allclose(q_t.T, ref_fwd(state), atol=1e-5, rtol=1e-5)

    # 4) Dispatcher small-batch path (fused XLA; Pallas launch would be overhead at B=8).
    q_small = jax.block_until_ready(network_forward(state[:8], w1, b1, w2, b2))
    assert jnp.allclose(q_small, ref_fwd(state[:8]), atol=1e-5, rtol=1e-5)

    print("KERNEL_OK")
</pallas_src>

<mosaic_0001>
module attributes {stable_mosaic.version = 11 : i64} {
  func.func @_mlp_kernel(%arg0: i32, %arg1: memref<5x8x128xf32, #tpu.memory_space<vmem>>, %arg2: memref<5x7xf32, #tpu.memory_space<smem>>, %arg3: memref<7xf32, #tpu.memory_space<smem>>, %arg4: memref<7x3xf32, #tpu.memory_space<smem>>, %arg5: memref<3xf32, #tpu.memory_space<smem>>, %arg6: memref<3x8x128xf32, #tpu.memory_space<vmem>>) attributes {dimension_semantics = [#tpu.dimension_semantics<parallel>], iteration_bounds = array<i64: 1>, scalar_prefetch = 0 : i64, scratch_operands = 0 : i64, tpu.core_type = #tpu.core_type<tc>, window_params = [{transform_indices = @transform_0, window_bounds = array<i64: 5, 8, 128>}, {transform_indices = @transform_1, window_bounds = array<i64: 5, 7>}, {transform_indices = @transform_2, window_bounds = array<i64: 7>}, {transform_indices = @transform_3, window_bounds = array<i64: 7, 3>}, {transform_indices = @transform_4, window_bounds = array<i64: 3>}, {transform_indices = @transform_5, window_bounds = array<i64: 3, 8, 128>}]} {
    %c0 = arith.constant 0 : index
    %c0_0 = arith.constant 0 : index
    %c0_1 = arith.constant 0 : index
    %0 = vector.load %arg1[%c0, %c0_0, %c0_1] : memref<5x8x128xf32, #tpu.memory_space<vmem>>, vector<1x8x128xf32>
    %1 = vector.shape_cast %0 : vector<1x8x128xf32> to vector<8x128xf32>
    %c1 = arith.constant 1 : index
    %c0_2 = arith.constant 0 : index
    %c0_3 = arith.constant 0 : index
    %2 = vector.load %arg1[%c1, %c0_2, %c0_3] : memref<5x8x128xf32, #tpu.memory_space<vmem>>, vector<1x8x128xf32>
    %3 = vector.shape_cast %2 : vector<1x8x128xf32> to vector<8x128xf32>
    %c2 = arith.constant 2 : index
    %c0_4 = arith.constant 0 : index
    %c0_5 = arith.constant 0 : index
    %4 = vector.load %arg1[%c2, %c0_4, %c0_5] : memref<5x8x128xf32, #tpu.memory_space<vmem>>, vector<1x8x128xf32>
    %5 = vector.shape_cast %4 : vector<1x8x128xf32> to vector<8x128xf32>
    %c3 = arith.constant 3 : index
    %c0_6 = arith.constant 0 : index
    %c0_7 = arith.constant 0 : index
    %6 = vector.load %arg1[%c3, %c0_6, %c0_7] : memref<5x8x128xf32, #tpu.memory_space<vmem>>, vector<1x8x128xf32>
    %7 = vector.shape_cast %6 : vector<1x8x128xf32> to vector<8x128xf32>
    %c4 = arith.constant 4 : index
    %c0_8 = arith.constant 0 : index
    %c0_9 = arith.constant 0 : index
    %8 = vector.load %arg1[%c4, %c0_8, %c0_9] : memref<5x8x128xf32, #tpu.memory_space<vmem>>, vector<1x8x128xf32>
    %9 = vector.shape_cast %8 : vector<1x8x128xf32> to vector<8x128xf32>
    %c0_10 = arith.constant 0 : index
    %10 = memref.load %arg5[%c0_10] : memref<3xf32, #tpu.memory_space<smem>>
    %11 = vector.broadcast %10 : f32 to vector<8x128xf32>
    %c1_11 = arith.constant 1 : index
    %12 = memref.load %arg5[%c1_11] : memref<3xf32, #tpu.memory_space<smem>>
    %13 = vector.broadcast %12 : f32 to vector<8x128xf32>
    %c2_12 = arith.constant 2 : index
    %14 = memref.load %arg5[%c2_12] : memref<3xf32, #tpu.memory_space<smem>>
    %15 = vector.broadcast %14 : f32 to vector<8x128xf32>
    %c0_13 = arith.constant 0 : index
    %16 = memref.load %arg3[%c0_13] : memref<7xf32, #tpu.memory_space<smem>>
    %17 = vector.broadcast %16 : f32 to vector<8x128xf32>
    %c0_14 = arith.constant 0 : index
    %c0_15 = arith.constant 0 : index
    %18 = memref.load %arg2[%c0_14, %c0_15] : memref<5x7xf32, #tpu.memory_space<smem>>
    %19 = vector.broadcast %18 : f32 to vector<8x128xf32>
    %20 = arith.mulf %19, %1 : vector<8x128xf32>
    %21 = arith.addf %17, %20 : vector<8x128xf32>
    %c1_16 = arith.constant 1 : index
    %c0_17 = arith.constant 0 : index
    %22 = memref.load %arg2[%c1_16, %c0_17] : memref<5x7xf32, #tpu.memory_space<smem>>
    %23 = vector.broadcast %22 : f32 to vector<8x128xf32>
    %24 = arith.mulf %23, %3 : vector<8x128xf32>
    %25 = arith.addf %21, %24 : vector<8x128xf32>
    %c2_18 = arith.constant 2 : index
    %c0_19 = arith.constant 0 : index
    %26 = memref.load %arg2[%c2_18, %c0_19] : memref<5x7xf32, #tpu.memory_space<smem>>
    %27 = vector.broadcast %26 : f32 to vector<8x128xf32>
    %28 = arith.mulf %27, %5 : vector<8x128xf32>
    %29 = arith.addf %25, %28 : vector<8x128xf32>
    %c3_20 = arith.constant 3 : index
    %c0_21 = arith.constant 0 : index
    %30 = memref.load %arg2[%c3_20, %c0_21] : memref<5x7xf32, #tpu.memory_space<smem>>
    %31 = vector.broadcast %30 : f32 to vector<8x128xf32>
    %32 = arith.mulf %31, %7 : vector<8x128xf32>
    %33 = arith.addf %29, %32 : vector<8x128xf32>
    %c4_22 = arith.constant 4 : index
    %c0_23 = arith.constant 0 : index
    %34 = memref.load %arg2[%c4_22, %c0_23] : memref<5x7xf32, #tpu.memory_space<smem>>
    %35 = vector.broadcast %34 : f32 to vector<8x128xf32>
    %36 = arith.mulf %35, %9 : vector<8x128xf32>
    %37 = arith.addf %33, %36 : vector<8x128xf32>
    %cst = arith.constant 0.000000e+00 : f32
    %38 = vector.broadcast %cst : f32 to vector<8x128xf32>
    %39 = arith.maximumf %37, %38 : vector<8x128xf32>
    %c0_24 = arith.constant 0 : index
    %c0_25 = arith.constant 0 : index
    %40 = memref.load %arg4[%c0_24, %c0_25] : memref<7x3xf32, #tpu.memory_space<smem>>
    %41 = vector.broadcast %40 : f32 to vector<8x128xf32>
    %42 = arith.mulf %41, %39 : vector<8x128xf32>
    %43 = arith.addf %11, %42 : vector<8x128xf32>
    %c0_26 = arith.constant 0 : index
    %c1_27 = arith.constant 1 : index
    %44 = memref.load %arg4[%c0_26, %c1_27] : memref<7x3xf32, #tpu.memory_space<smem>>
    %45 = vector.broadcast %44 : f32 to vector<8x128xf32>
    %46 = arith.mulf %45, %39 : vector<8x128xf32>
    %47 = arith.addf %13, %46 : vector<8x128xf32>
    %c0_28 = arith.constant 0 : index
    %c2_29 = arith.constant 2 : index
    %48 = memref.load %arg4[%c0_28, %c2_29] : memref<7x3xf32, #tpu.memory_space<smem>>
    %49 = vector.broadcast %48 : f32 to vector<8x128xf32>
    %50 = arith.mulf %49, %39 : vector<8x128xf32>
    %51 = arith.addf %15, %50 : vector<8x128xf32>
    %c1_30 = arith.constant 1 : index
    %52 = memref.load %arg3[%c1_30] : memref<7xf32, #tpu.memory_space<smem>>
    %53 = vector.broadcast %52 : f32 to vector<8x128xf32>
    %c0_31 = arith.constant 0 : index
    %c1_32 = arith.constant 1 : index
    %54 = memref.load %arg2[%c0_31, %c1_32] : memref<5x7xf32, #tpu.memory_space<smem>>
    %55 = vector.broadcast %54 : f32 to vector<8x128xf32>
    %56 = arith.mulf %55, %1 : vector<8x128xf32>
    %57 = arith.addf %53, %56 : vector<8x128xf32>
    %c1_33 = arith.constant 1 : index
    %c1_34 = arith.constant 1 : index
    %58 = memref.load %arg2[%c1_33, %c1_34] : memref<5x7xf32, #tpu.memory_space<smem>>
    %59 = vector.broadcast %58 : f32 to vector<8x128xf32>
    %60 = arith.mulf %59, %3 : vector<8x128xf32>
    %61 = arith.addf %57, %60 : vector<8x128xf32>
    %c2_35 = arith.constant 2 : index
    %c1_36 = arith.constant 1 : index
    %62 = memref.load %arg2[%c2_35, %c1_36] : memref<5x7xf32, #tpu.memory_space<smem>>
    %63 = vector.broadcast %62 : f32 to vector<8x128xf32>
    %64 = arith.mulf %63, %5 : vector<8x128xf32>
    %65 = arith.addf %61, %64 : vector<8x128xf32>
    %c3_37 = arith.constant 3 : index
    %c1_38 = arith.constant 1 : index
    %66 = memref.load %arg2[%c3_37, %c1_38] : memref<5x7xf32, #tpu.memory_space<smem>>
    %67 = vector.broadcast %66 : f32 to vector<8x128xf32>
    %68 = arith.mulf %67, %7 : vector<8x128xf32>
    %69 = arith.addf %65, %68 : vector<8x128xf32>
    %c4_39 = arith.constant 4 : index
    %c1_40 = arith.constant 1 : index
    %70 = memref.load %arg2[%c4_39, %c1_40] : memref<5x7xf32, #tpu.memory_space<smem>>
    %71 = vector.broadcast %70 : f32 to vector<8x128xf32>
    %72 = arith.mulf %71, %9 : vector<8x128xf32>
    %73 = arith.addf %69, %72 : vector<8x128xf32>
    %cst_41 = arith.constant 0.000000e+00 : f32
    %74 = vector.broadcast %cst_41 : f32 to vector<8x128xf32>
    %75 = arith.maximumf %73, %74 : vector<8x128xf32>
    %c1_42 = arith.constant 1 : index
    %c0_43 = arith.constant 0 : index
    %76 = memref.load %arg4[%c1_42, %c0_43] : memref<7x3xf32, #tpu.memory_space<smem>>
    %77 = vector.broadcast %76 : f32 to vector<8x128xf32>
    %78 = arith.mulf %77, %75 : vector<8x128xf32>
    %79 = arith.addf %43, %78 : vector<8x128xf32>
    %c1_44 = arith.constant 1 : index
    %c1_45 = arith.constant 1 : index
    %80 = memref.load %arg4[%c1_44, %c1_45] : memref<7x3xf32, #tpu.memory_space<smem>>
    %81 = vector.broadcast %80 : f32 to vector<8x128xf32>
    %82 = arith.mulf %81, %75 : vector<8x128xf32>
    %83 = arith.addf %47, %82 : vector<8x128xf32>
    %c1_46 = arith.constant 1 : index
    %c2_47 = arith.constant 2 : index
    %84 = memref.load %arg4[%c1_46, %c2_47] : memref<7x3xf32, #tpu.memory_space<smem>>
    %85 = vector.broadcast %84 : f32 to vector<8x128xf32>
    %86 = arith.mulf %85, %75 : vector<8x128xf32>
    %87 = arith.addf %51, %86 : vector<8x128xf32>
    %c2_48 = arith.constant 2 : index
    %88 = memref.load %arg3[%c2_48] : memref<7xf32, #tpu.memory_space<smem>>
    %89 = vector.broadcast %88 : f32 to vector<8x128xf32>
    %c0_49 = arith.constant 0 : index
    %c2_50 = arith.constant 2 : index
    %90 = memref.load %arg2[%c0_49, %c2_50] : memref<5x7xf32, #tpu.memory_space<smem>>
    %91 = vector.broadcast %90 : f32 to vector<8x128xf32>
    %92 = arith.mulf %91, %1 : vector<8x128xf32>
    %93 = arith.addf %89, %92 : vector<8x128xf32>
    %c1_51 = arith.constant 1 : index
    %c2_52 = arith.constant 2 : index
    %94 = memref.load %arg2[%c1_51, %c2_52] : memref<5x7xf32, #tpu.memory_space<smem>>
    %95 = vector.broadcast %94 : f32 to vector<8x128xf32>
    %96 = arith.mulf %95, %3 : vector<8x128xf32>
    %97 = arith.addf %93, %96 : vector<8x128xf32>
    %c2_53 = arith.constant 2 : index
    %c2_54 = arith.constant 2 : index
    %98 = memref.load %arg2[%c2_53, %c2_54] : memref<5x7xf32, #tpu.memory_space<smem>>
    %99 = vector.broadcast %98 : f32 to vector<8x128xf32>
    %100 = arith.mulf %99, %5 : vector<8x128xf32>
    %101 = arith.addf %97, %100 : vector<8x128xf32>
    %c3_55 = arith.constant 3 : index
    %c2_56 = arith.constant 2 : index
    %102 = memref.load %arg2[%c3_55, %c2_56] : memref<5x7xf32, #tpu.memory_space<smem>>
    %103 = vector.broadcast %102 : f32 to vector<8x128xf32>
    %104 = arith.mulf %103, %7 : vector<8x128xf32>
    %105 = arith.addf %101, %104 : vector<8x128xf32>
    %c4_57 = arith.constant 4 : index
    %c2_58 = arith.constant 2 : index
    %106 = memref.load %arg2[%c4_57, %c2_58] : memref<5x7xf32, #tpu.memory_space<smem>>
    %107 = vector.broadcast %106 : f32 to vector<8x128xf32>
    %108 = arith.mulf %107, %9 : vector<8x128xf32>
    %109 = arith.addf %105, %108 : vector<8x128xf32>
    %cst_59 = arith.constant 0.000000e+00 : f32
    %110 = vector.broadcast %cst_59 : f32 to vector<8x128xf32>
    %111 = arith.maximumf %109, %110 : vector<8x128xf32>
    %c2_60 = arith.constant 2 : index
    %c0_61 = arith.constant 0 : index
    %112 = memref.load %arg4[%c2_60, %c0_61] : memref<7x3xf32, #tpu.memory_space<smem>>
    %113 = vector.broadcast %112 : f32 to vector<8x128xf32>
    %114 = arith.mulf %113, %111 : vector<8x128xf32>
    %115 = arith.addf %79, %114 : vector<8x128xf32>
    %c2_62 = arith.constant 2 : index
    %c1_63 = arith.constant 1 : index
    %116 = memref.load %arg4[%c2_62, %c1_63] : memref<7x3xf32, #tpu.memory_space<smem>>
    %117 = vector.broadcast %116 : f32 to vector<8x128xf32>
    %118 = arith.mulf %117, %111 : vector<8x128xf32>
    %119 = arith.addf %83, %118 : vector<8x128xf32>
    %c2_64 = arith.constant 2 : index
    %c2_65 = arith.constant 2 : index
    %120 = memref.load %arg4[%c2_64, %c2_65] : memref<7x3xf32, #tpu.memory_space<smem>>
    %121 = vector.broadcast %120 : f32 to vector<8x128xf32>
    %122 = arith.mulf %121, %111 : vector<8x128xf32>
    %123 = arith.addf %87, %122 : vector<8x128xf32>
    %c3_66 = arith.constant 3 : index
    %124 = memref.load %arg3[%c3_66] : memref<7xf32, #tpu.memory_space<smem>>
    %125 = vector.broadcast %124 : f32 to vector<8x128xf32>
    %c0_67 = arith.constant 0 : index
    %c3_68 = arith.constant 3 : index
    %126 = memref.load %arg2[%c0_67, %c3_68] : memref<5x7xf32, #tpu.memory_space<smem>>
    %127 = vector.broadcast %126 : f32 to vector<8x128xf32>
    %128 = arith.mulf %127, %1 : vector<8x128xf32>
    %129 = arith.addf %125, %128 : vector<8x128xf32>
    %c1_69 = arith.constant 1 : index
    %c3_70 = arith.constant 3 : index
    %130 = memref.load %arg2[%c1_69, %c3_70] : memref<5x7xf32, #tpu.memory_space<smem>>
    %131 = vector.broadcast %130 : f32 to vector<8x128xf32>
    %132 = arith.mulf %131, %3 : vector<8x128xf32>
    %133 = arith.addf %129, %132 : vector<8x128xf32>
    %c2_71 = arith.constant 2 : index
    %c3_72 = arith.constant 3 : index
    %134 = memref.load %arg2[%c2_71, %c3_72] : memref<5x7xf32, #tpu.memory_space<smem>>
    %135 = vector.broadcast %134 : f32 to vector<8x128xf32>
    %136 = arith.mulf %135, %5 : vector<8x128xf32>
    %137 = arith.addf %133, %136 : vector<8x128xf32>
    %c3_73 = arith.constant 3 : index
    %c3_74 = arith.constant 3 : index
    %138 = memref.load %arg2[%c3_73, %c3_74] : memref<5x7xf32, #tpu.memory_space<smem>>
    %139 = vector.broadcast %138 : f32 to vector<8x128xf32>
    %140 = arith.mulf %139, %7 : vector<8x128xf32>
    %141 = arith.addf %137, %140 : vector<8x128xf32>
    %c4_75 = arith.constant 4 : index
    %c3_76 = arith.constant 3 : index
    %142 = memref.load %arg2[%c4_75, %c3_76] : memref<5x7xf32, #tpu.memory_space<smem>>
    %143 = vector.broadcast %142 : f32 to vector<8x128xf32>
    %144 = arith.mulf %143, %9 : vector<8x128xf32>
    %145 = arith.addf %141, %144 : vector<8x128xf32>
    %cst_77 = arith.constant 0.000000e+00 : f32
    %146 = vector.broadcast %cst_77 : f32 to vector<8x128xf32>
    %147 = arith.maximumf %145, %146 : vector<8x128xf32>
    %c3_78 = arith.constant 3 : index
    %c0_79 = arith.constant 0 : index
    %148 = memref.load %arg4[%c3_78, %c0_79] : memref<7x3xf32, #tpu.memory_space<smem>>
    %149 = vector.broadcast %148 : f32 to vector<8x128xf32>
    %150 = arith.mulf %149, %147 : vector<8x128xf32>
    %151 = arith.addf %115, %150 : vector<8x128xf32>
    %c3_80 = arith.constant 3 : index
    %c1_81 = arith.constant 1 : index
    %152 = memref.load %arg4[%c3_80, %c1_81] : memref<7x3xf32, #tpu.memory_space<smem>>
    %153 = vector.broadcast %152 : f32 to vector<8x128xf32>
    %154 = arith.mulf %153, %147 : vector<8x128xf32>
    %155 = arith.addf %119, %154 : vector<8x128xf32>
    %c3_82 = arith.constant 3 : index
    %c2_83 = arith.constant 2 : index
    %156 = memref.load %arg4[%c3_82, %c2_83] : memref<7x3xf32, #tpu.memory_space<smem>>
    %157 = vector.broadcast %156 : f32 to vector<8x128xf32>
    %158 = arith.mulf %157, %147 : vector<8x128xf32>
    %159 = arith.addf %123, %158 : vector<8x128xf32>
    %c4_84 = arith.constant 4 : index
    %160 = memref.load %arg3[%c4_84] : memref<7xf32, #tpu.memory_space<smem>>
    %161 = vector.broadcast %160 : f32 to vector<8x128xf32>
    %c0_85 = arith.constant 0 : index
    %c4_86 = arith.constant 4 : index
    %162 = memref.load %arg2[%c0_85, %c4_86] : memref<5x7xf32, #tpu.memory_space<smem>>
    %163 = vector.broadcast %162 : f32 to vector<8x128xf32>
    %164 = arith.mulf %163, %1 : vector<8x128xf32>
    %165 = arith.addf %161, %164 : vector<8x128xf32>
    %c1_87 = arith.constant 1 : index
    %c4_88 = arith.constant 4 : index
    %166 = memref.load %arg2[%c1_87, %c4_88] : memref<5x7xf32, #tpu.memory_space<smem>>
    %167 = vector.broadcast %166 : f32 to vector<8x128xf32>
    %168 = arith.mulf %167, %3 : vector<8x128xf32>
    %169 = arith.addf %165, %168 : vector<8x128xf32>
    %c2_89 = arith.constant 2 : index
    %c4_90 = arith.constant 4 : index
    %170 = memref.load %arg2[%c2_89, %c4_90] : memref<5x7xf32, #tpu.memory_space<smem>>
    %171 = vector.broadcast %170 : f32 to vector<8x128xf32>
    %172 = arith.mulf %171, %5 : vector<8x128xf32>
    %173 = arith.addf %169, %172 : vector<8x128xf32>
    %c3_91 = arith.constant 3 : index
    %c4_92 = arith.constant 4 : index
    %174 = memref.load %arg2[%c3_91, %c4_92] : memref<5x7xf32, #tpu.memory_space<smem>>
    %175 = vector.broadcast %174 : f32 to vector<8x128xf32>
    %176 = arith.mulf %175, %7 : vector<8x128xf32>
    %177 = arith.addf %173, %176 : vector<8x128xf32>
    %c4_93 = arith.constant 4 : index
    %c4_94 = arith.constant 4 : index
    %178 = memref.load %arg2[%c4_93, %c4_94] : memref<5x7xf32, #tpu.memory_space<smem>>
    %179 = vector.broadcast %178 : f32 to vector<8x128xf32>
    %180 = arith.mulf %179, %9 : vector<8x128xf32>
    %181 = arith.addf %177, %180 : vector<8x128xf32>
    %cst_95 = arith.constant 0.000000e+00 : f32
    %182 = vector.broadcast %cst_95 : f32 to vector<8x128xf32>
    %183 = arith.maximumf %181, %182 : vector<8x128xf32>
    %c4_96 = arith.constant 4 : index
    %c0_97 = arith.constant 0 : index
    %184 = memref.load %arg4[%c4_96, %c0_97] : memref<7x3xf32, #tpu.memory_space<smem>>
    %185 = vector.broadcast %184 : f32 to vector<8x128xf32>
    %186 = arith.mulf %185, %183 : vector<8x128xf32>
    %187 = arith.addf %151, %186 : vector<8x128xf32>
    %c4_98 = arith.constant 4 : index
    %c1_99 = arith.constant 1 : index
    %188 = memref.load %arg4[%c4_98, %c1_99] : memref<7x3xf32, #tpu.memory_space<smem>>
    %189 = vector.broadcast %188 : f32 to vector<8x128xf32>
    %190 = arith.mulf %189, %183 : vector<8x128xf32>
    %191 = arith.addf %155, %190 : vector<8x128xf32>
    %c4_100 = arith.constant 4 : index
    %c2_101 = arith.constant 2 : index
    %192 = memref.load %arg4[%c4_100, %c2_101] : memref<7x3xf32, #tpu.memory_space<smem>>
    %193 = vector.broadcast %192 : f32 to vector<8x128xf32>
    %194 = arith.mulf %193, %183 : vector<8x128xf32>
    %195 = arith.addf %159, %194 : vector<8x128xf32>
    %c5 = arith.constant 5 : index
    %196 = memref.load %arg3[%c5] : memref<7xf32, #tpu.memory_space<smem>>
    %197 = vector.broadcast %196 : f32 to vector<8x128xf32>
    %c0_102 = arith.constant 0 : index
    %c5_103 = arith.constant 5 : index
    %198 = memref.load %arg2[%c0_102, %c5_103] : memref<5x7xf32, #tpu.memory_space<smem>>
    %199 = vector.broadcast %198 : f32 to vector<8x128xf32>
    %200 = arith.mulf %199, %1 : vector<8x128xf32>
    %201 = arith.addf %197, %200 : vector<8x128xf32>
    %c1_104 = arith.constant 1 : index
    %c5_105 = arith.constant 5 : index
    %202 = memref.load %arg2[%c1_104, %c5_105] : memref<5x7xf32, #tpu.memory_space<smem>>
    %203 = vector.broadcast %202 : f32 to vector<8x128xf32>
    %204 = arith.mulf %203, %3 : vector<8x128xf32>
    %205 = arith.addf %201, %204 : vector<8x128xf32>
    %c2_106 = arith.constant 2 : index
    %c5_107 = arith.constant 5 : index
    %206 = memref.load %arg2[%c2_106, %c5_107] : memref<5x7xf32, #tpu.memory_space<smem>>
    %207 = vector.broadcast %206 : f32 to vector<8x128xf32>
    %208 = arith.mulf %207, %5 : vector<8x128xf32>
    %209 = arith.addf %205, %208 : vector<8x128xf32>
    %c3_108 = arith.constant 3 : index
    %c5_109 = arith.constant 5 : index
    %210 = memref.load %arg2[%c3_108, %c5_109] : memref<5x7xf32, #tpu.memory_space<smem>>
    %211 = vector.broadcast %210 : f32 to vector<8x128xf32>
    %212 = arith.mulf %211, %7 : vector<8x128xf32>
    %213 = arith.addf %209, %212 : vector<8x128xf32>
    %c4_110 = arith.constant 4 : index
    %c5_111 = arith.constant 5 : index
    %214 = memref.load %arg2[%c4_110, %c5_111] : memref<5x7xf32, #tpu.memory_space<smem>>
    %215 = vector.broadcast %214 : f32 to vector<8x128xf32>
    %216 = arith.mulf %215, %9 : vector<8x128xf32>
    %217 = arith.addf %213, %216 : vector<8x128xf32>
    %cst_112 = arith.constant 0.000000e+00 : f32
    %218 = vector.broadcast %cst_112 : f32 to vector<8x128xf32>
    %219 = arith.maximumf %217, %218 : vector<8x128xf32>
    %c5_113 = arith.constant 5 : index
    %c0_114 = arith.constant 0 : index
    %220 = memref.load %arg4[%c5_113, %c0_114] : memref<7x3xf32, #tpu.memory_space<smem>>
    %221 = vector.broadcast %220 : f32 to vector<8x128xf32>
    %222 = arith.mulf %221, %219 : vector<8x128xf32>
    %223 = arith.addf %187, %222 : vector<8x128xf32>
    %c5_115 = arith.constant 5 : index
    %c1_116 = arith.constant 1 : index
    %224 = memref.load %arg4[%c5_115, %c1_116] : memref<7x3xf32, #tpu.memory_space<smem>>
    %225 = vector.broadcast %224 : f32 to vector<8x128xf32>
    %226 = arith.mulf %225, %219 : vector<8x128xf32>
    %227 = arith.addf %191, %226 : vector<8x128xf32>
    %c5_117 = arith.constant 5 : index
    %c2_118 = arith.constant 2 : index
    %228 = memref.load %arg4[%c5_117, %c2_118] : memref<7x3xf32, #tpu.memory_space<smem>>
    %229 = vector.broadcast %228 : f32 to vector<8x128xf32>
    %230 = arith.mulf %229, %219 : vector<8x128xf32>
    %231 = arith.addf %195, %230 : vector<8x128xf32>
    %c6 = arith.constant 6 : index
    %232 = memref.load %arg3[%c6] : memref<7xf32, #tpu.memory_space<smem>>
    %233 = vector.broadcast %232 : f32 to vector<8x128xf32>
    %c0_119 = arith.constant 0 : index
    %c6_120 = arith.constant 6 : index
    %234 = memref.load %arg2[%c0_119, %c6_120] : memref<5x7xf32, #tpu.memory_space<smem>>
    %235 = vector.broadcast %234 : f32 to vector<8x128xf32>
    %236 = arith.mulf %235, %1 : vector<8x128xf32>
    %237 = arith.addf %233, %236 : vector<8x128xf32>
    %c1_121 = arith.constant 1 : index
    %c6_122 = arith.constant 6 : index
    %238 = memref.load %arg2[%c1_121, %c6_122] : memref<5x7xf32, #tpu.memory_space<smem>>
    %239 = vector.broadcast %238 : f32 to vector<8x128xf32>
    %240 = arith.mulf %239, %3 : vector<8x128xf32>
    %241 = arith.addf %237, %240 : vector<8x128xf32>
    %c2_123 = arith.constant 2 : index
    %c6_124 = arith.constant 6 : index
    %242 = memref.load %arg2[%c2_123, %c6_124] : memref<5x7xf32, #tpu.memory_space<smem>>
    %243 = vector.broadcast %242 : f32 to vector<8x128xf32>
    %244 = arith.mulf %243, %5 : vector<8x128xf32>
    %245 = arith.addf %241, %244 : vector<8x128xf32>
    %c3_125 = arith.constant 3 : index
    %c6_126 = arith.constant 6 : index
    %246 = memref.load %arg2[%c3_125, %c6_126] : memref<5x7xf32, #tpu.memory_space<smem>>
    %247 = vector.broadcast %246 : f32 to vector<8x128xf32>
    %248 = arith.mulf %247, %7 : vector<8x128xf32>
    %249 = arith.addf %245, %248 : vector<8x128xf32>
    %c4_127 = arith.constant 4 : index
    %c6_128 = arith.constant 6 : index
    %250 = memref.load %arg2[%c4_127, %c6_128] : memref<5x7xf32, #tpu.memory_space<smem>>
    %251 = vector.broadcast %250 : f32 to vector<8x128xf32>
    %252 = arith.mulf %251, %9 : vector<8x128xf32>
    %253 = arith.addf %249, %252 : vector<8x128xf32>
    %cst_129 = arith.constant 0.000000e+00 : f32
    %254 = vector.broadcast %cst_129 : f32 to vector<8x128xf32>
    %255 = arith.maximumf %253, %254 : vector<8x128xf32>
    %c6_130 = arith.constant 6 : index
    %c0_131 = arith.constant 0 : index
    %256 = memref.load %arg4[%c6_130, %c0_131] : memref<7x3xf32, #tpu.memory_space<smem>>
    %257 = vector.broadcast %256 : f32 to vector<8x128xf32>
    %258 = arith.mulf %257, %255 : vector<8x128xf32>
    %259 = arith.addf %223, %258 : vector<8x128xf32>
    %c6_132 = arith.constant 6 : index
    %c1_133 = arith.constant 1 : index
    %260 = memref.load %arg4[%c6_132, %c1_133] : memref<7x3xf32, #tpu.memory_space<smem>>
    %261 = vector.broadcast %260 : f32 to vector<8x128xf32>
    %262 = arith.mulf %261, %255 : vector<8x128xf32>
    %263 = arith.addf %227, %262 : vector<8x128xf32>
    %c6_134 = arith.constant 6 : index
    %c2_135 = arith.constant 2 : index
    %264 = memref.load %arg4[%c6_134, %c2_135] : memref<7x3xf32, #tpu.memory_space<smem>>
    %265 = vector.broadcast %264 : f32 to vector<8x128xf32>
    %266 = arith.mulf %265, %255 : vector<8x128xf32>
    %267 = arith.addf %231, %266 : vector<8x128xf32>
    %c0_136 = arith.constant 0 : index
    %c0_137 = arith.constant 0 : index
    %c0_138 = arith.constant 0 : index
    %268 = vector.load %arg6[%c0_136, %c0_137, %c0_138] : memref<3x8x128xf32, #tpu.memory_space<vmem>>, vector<1x8x128xf32>
    %269 = vector.shape_cast %268 : vector<1x8x128xf32> to vector<8x128xf32>
    %270 = vector.shape_cast %259 : vector<8x128xf32> to vector<1x8x128xf32>
    tpu.vector_store %arg6[%c0_136, %c0_137, %c0_138], %270 {strides = array<i32>} : memref<3x8x128xf32, #tpu.memory_space<vmem>>, vector<1x8x128xf32>,
    %c1_139 = arith.constant 1 : index
    %c0_140 = arith.constant 0 : index
    %c0_141 = arith.constant 0 : index
    %271 = vector.load %arg6[%c1_139, %c0_140, %c0_141] : memref<3x8x128xf32, #tpu.memory_space<vmem>>, vector<1x8x128xf32>
    %272 = vector.shape_cast %271 : vector<1x8x128xf32> to vector<8x128xf32>
    %273 = vector.shape_cast %263 : vector<8x128xf32> to vector<1x8x128xf32>
    tpu.vector_store %arg6[%c1_139, %c0_140, %c0_141], %273 {strides = array<i32>} : memref<3x8x128xf32, #tpu.memory_space<vmem>>, vector<1x8x128xf32>,
    %c2_142 = arith.constant 2 : index
    %c0_143 = arith.constant 0 : index
    %c0_144 = arith.constant 0 : index
    %274 = vector.load %arg6[%c2_142, %c0_143, %c0_144] : memref<3x8x128xf32, #tpu.memory_space<vmem>>, vector<1x8x128xf32>
    %275 = vector.shape_cast %274 : vector<1x8x128xf32> to vector<8x128xf32>
    %276 = vector.shape_cast %267 : vector<8x128xf32> to vector<1x8x128xf32>
    tpu.vector_store %arg6[%c2_142, %c0_143, %c0_144], %276 {strides = array<i32>} : memref<3x8x128xf32, #tpu.memory_space<vmem>>, vector<1x8x128xf32>,
    return
  }
  func.func @transform_0(%arg0: i32) -> (i32, i32, i32) {
    %c0_i32 = arith.constant 0 : i32
    %c0_i32_0 = arith.constant 0 : i32
    %c0_i32_1 = arith.constant 0 : i32
    return %c0_i32, %arg0, %c0_i32_0 : i32, i32, i32
  }
  func.func @transform_1(%arg0: i32) -> (i32, i32) {
    %c0_i32 = arith.constant 0 : i32
    %c0_i32_0 = arith.constant 0 : i32
    %c0_i32_1 = arith.constant 0 : i32
    return %c0_i32, %c0_i32_0 : i32, i32
  }
  func.func @transform_2(%arg0: i32) -> i32 {
    %c0_i32 = arith.constant 0 : i32
    %c0_i32_0 = arith.constant 0 : i32
    return %c0_i32 : i32
  }
  func.func @transform_3(%arg0: i32) -> (i32, i32) {
    %c0_i32 = arith.constant 0 : i32
    %c0_i32_0 = arith.constant 0 : i32
    %c0_i32_1 = arith.constant 0 : i32
    return %c0_i32, %c0_i32_0 : i32, i32
  }
  func.func @transform_4(%arg0: i32) -> i32 {
    %c0_i32 = arith.constant 0 : i32
    %c0_i32_0 = arith.constant 0 : i32
    return %c0_i32 : i32
  }
  func.func @transform_5(%arg0: i32) -> (i32, i32, i32) {
    %c0_i32 = arith.constant 0 : i32
    %c0_i32_0 = arith.constant 0 : i32
    %c0_i32_1 = arith.constant 0 : i32
    return %c0_i32, %arg0, %c0_i32_0 : i32, i32, i32
  }
}

</mosaic_0001>

<llo_original>
// kernel: tpu_custom_call.1
$region0: #{tpu_custom_call.1}
  #allocation0 [shape = 'u32[]', space=smem, size = 0x4, offset = 0x4, fixed_abs, tag = 'smem constant byte address 0x4 - core index']
  #allocation1 [shape = 'u32[144,128]{1,0:T(1,128)}', space=vmem, size = 0x12000, scoped, tag = 'internal scratch']
  %s0 = inlined_call_operand.hbm [shape: f32[5,8,128], index: 0, kind: input, shape index: {}]
  %s1 = inlined_call_operand.hbm [shape: f32[5,7], index: 1, kind: input, shape index: {}]
  %s2 = inlined_call_operand.hbm [shape: f32[7], index: 2, kind: input, shape index: {}]
  %s3 = inlined_call_operand.hbm [shape: f32[7,3], index: 3, kind: input, shape index: {}]
  %s4 = inlined_call_operand.hbm [shape: f32[3], index: 4, kind: input, shape index: {}]
  %s5 = inlined_call_operand.hbm [shape: f32[3,8,128], index: 5, kind: output, shape index: {}]
  %s6 = sld [smem:[#allocation0]]
  $region50: #{tpu_custom_call.1} parent=0
    _
  %s8 = ssub.s32 1, %s6
  %s9 = scalar_select 0, %s8, %s6
  $region1: #{tpu_custom_call.1} parent=0
    #allocation2 [shape = 'u8[20480]{0}', space=vmem, size = 0x5000, scoped, tag = 'input window, operand 0, single buffered']
    #allocation3 [shape = 's32[1]{0}', space=sflag, size = 0x4, scoped, tag = 'scoped memory for tpu_custom_call.1']
    #allocation4 [shape = 's32[1]{0}', space=sflag, size = 0x4, scoped, tag = 'scoped memory for tpu_custom_call.1']
    #allocation5 [shape = 's32[1]{0}', space=sflag, size = 0x4, scoped, tag = 'scoped memory for tpu_custom_call.1']
    #allocation6 [shape = 'u8[4096]{0}', space=smem, size = 0x1000, scoped, tag = 'input window, operand 1, single buffered']
    #allocation7 [shape = 'u8[512]{0}', space=smem, size = 0x200, scoped, tag = 'input window, operand 2, single buffered']
    #allocation8 [shape = 's32[1]{0}', space=sflag, size = 0x4, scoped, tag = 'scoped memory for tpu_custom_call.1']
    #allocation9 [shape = 'u8[4096]{0}', space=smem, size = 0x1000, scoped, tag = 'input window, operand 3, single buffered']
    #allocation10 [shape = 'u8[512]{0}', space=smem, size = 0x200, scoped, tag = 'input window, operand 4, single buffered']
    #allocation11 [shape = 's32[1]{0}', space=sflag, size = 0x4, scoped, tag = 'scoped memory for tpu_custom_call.1']
    #allocation12 [shape = 'u8[12288]{0}', space=vmem, size = 0x3000, scoped, tag = 'output window, operand 0, single buffered']
    %10 = vsyncpa [#allocation3], 0
    %11 = vsyncpa [#allocation5], 0
    %12 = vsyncpa [#allocation8], 0
    %13 = vsyncpa [#allocation11], 0
    %14 = vsyncpa [#allocation4], 0
    // Predicated region
    $region2: #{tpu_custom_call.1} parent=1 // pred_check
      _
    $region3: #{tpu_custom_call.1} parent=1 // pred_check_branch
      %16 = sbr.rel (0) target = $region5
    $region4: #{tpu_custom_call.1} parent=1 // pred_region
      %s18 = ssub.s32 640, 640
      %19 = vsyncadd [#allocation3], %s18
      %s20 = sshll.u32 [#allocation2], 4
      %s21 = int_to_ptr.vmem [resolvable:$true] %s20
      %26 = dma.hbm_to_vmem [thread:$0]  %s0, 640, %s21, [#allocation3], 128, 128, 8
    $region5: #{tpu_custom_call.1} parent=1 // pred_fallthru
      _
    // Predicated region
    $region6: #{tpu_custom_call.1} parent=1 // pred_check
      _
    $region7: #{tpu_custom_call.1} parent=1 // pred_check_branch
      %28 = sbr.rel (0) target = $region9
    $region8: #{tpu_custom_call.1} parent=1 // pred_region
      %s30 = ssub.s32 128, 128
      %31 = vsyncadd [#allocation5], %s30
      %34 = dma.hbm_to_smem %s1, 128, [#allocation6], [#allocation5]
    $region9: #{tpu_custom_call.1} parent=1 // pred_fallthru
      _
    // Predicated region
    $region10: #{tpu_custom_call.1} parent=1 // pred_check
      _
    $region11: #{tpu_custom_call.1} parent=1 // pred_check_branch
      %36 = sbr.rel (0) target = $region13
    $region12: #{tpu_custom_call.1} parent=1 // pred_region
      %s38 = ssub.s32 16, 16
      %39 = vsyncadd [#allocation8], %s38
      %42 = dma.hbm_to_smem %s2, 16, [#allocation7], [#allocation8]
    $region13: #{tpu_custom_call.1} parent=1 // pred_fallthru
      _
    // Predicated region
    $region14: #{tpu_custom_call.1} parent=1 // pred_check
      _
    $region15: #{tpu_custom_call.1} parent=1 // pred_check_branch
      %44 = sbr.rel (0) target = $region17
    $region16: #{tpu_custom_call.1} parent=1 // pred_region
      %s46 = ssub.s32 128, 128
      %47 = vsyncadd [#allocation8], %s46
      %50 = dma.hbm_to_smem %s3, 128, [#allocation9], [#allocation8]
    $region17: #{tpu_custom_call.1} parent=1 // pred_fallthru
      _
    // Predicated region
    $region18: #{tpu_custom_call.1} parent=1 // pred_check
      _
    $region19: #{tpu_custom_call.1} parent=1 // pred_check_branch
      %52 = sbr.rel (0) target = $region21
    $region20: #{tpu_custom_call.1} parent=1 // pred_region
      %s54 = ssub.s32 16, 16
      %55 = vsyncadd [#allocation11], %s54
      %58 = dma.hbm_to_smem %s4, 16, [#allocation10], [#allocation11]
    $region21: #{tpu_custom_call.1} parent=1 // pred_fallthru
      _
    // Predicated region
    $region22: #{tpu_custom_call.1} parent=1 // pred_check
      _
    $region23: #{tpu_custom_call.1} parent=1 // pred_check_branch
      %60 = sbr.rel (0) target = $region25
    $region24: #{tpu_custom_call.1} parent=1 // pred_region
      %61 = dma.done [#allocation3], 640
    $region25: #{tpu_custom_call.1} parent=1 // pred_fallthru
      _
    // Predicated region
    $region26: #{tpu_custom_call.1} parent=1 // pred_check
      _
    $region27: #{tpu_custom_call.1} parent=1 // pred_check_branch
      %63 = sbr.rel (0) target = $region29
    $region28: #{tpu_custom_call.1} parent=1 // pred_region
      %64 = dma.done [#allocation5], 128
    $region29: #{tpu_custom_call.1} parent=1 // pred_fallthru
      _
    // Predicated region
    $region30: #{tpu_custom_call.1} parent=1 // pred_check
      _
    $region31: #{tpu_custom_call.1} parent=1 // pred_check_branch
      %66 = sbr.rel (0) target = $region33
    $region32: #{tpu_custom_call.1} parent=1 // pred_region
      %67 = dma.done [#allocation8], 16
    $region33: #{tpu_custom_call.1} parent=1 // pred_fallthru
      _
    // Predicated region
    $region34: #{tpu_custom_call.1} parent=1 // pred_check
      _
    $region35: #{tpu_custom_call.1} parent=1 // pred_check_branch
      %69 = sbr.rel (0) target = $region37
    $region36: #{tpu_custom_call.1} parent=1 // pred_region
      %70 = dma.done [#allocation8], 128
    $region37: #{tpu_custom_call.1} parent=1 // pred_fallthru
      _
    // Predicated region
    $region38: #{tpu_custom_call.1} parent=1 // pred_check
      _
    $region39: #{tpu_custom_call.1} parent=1 // pred_check_branch
      %72 = sbr.rel (0) target = $region41
    $region40: #{tpu_custom_call.1} parent=1 // pred_region
      %73 = dma.done [#allocation11], 16
    $region41: #{tpu_custom_call.1} parent=1 // pred_fallthru
      _
    %74 = sfence
    %v75 = vld [vmem:[#allocation2] sm:$0xff]
    %s76 = scalar_lea.vmem [#allocation2], 8
    %v77 = vld [vmem:[%s76] sm:$0xff]
    %s78 = scalar_lea.vmem [#allocation2], 16
    %v79 = vld [vmem:[%s78] sm:$0xff]
    %s80 = scalar_lea.vmem [#allocation2], 24
    %v81 = vld [vmem:[%s80] sm:$0xff]
    %s82 = scalar_lea.vmem [#allocation2], 32
    %v83 = vld [vmem:[%s82] sm:$0xff]
    %s84 = sld [smem:[#allocation10]]
    %v85 = vstv %s84
    %s86 = sld [smem:[#allocation10 + $0x1]]
    %v87 = vstv %s86
    %s88 = sld [smem:[#allocation10 + $0x2]]
    %v89 = vstv %s88
    %s90 = sld [smem:[#allocation7]]
    %v91 = vstv %s90
    %s92 = sld [smem:[#allocation6]]
    %v93 = vstv %s92
    %v94 = vmul.f32 %v93, %v75
    %v95 = vadd.f32 %v91, %v94
    %s96 = sld [smem:[#allocation6 + $0x80]]
    %v97 = vstv %s96
    %v98 = vmul.f32 %v97, %v77
    %v99 = vadd.f32 %v95, %v98
    %s100 = sld [smem:[#allocation6 + $0x100]]
    %v101 = vstv %s100
    %v102 = vmul.f32 %v101, %v79
    %v103 = vadd.f32 %v99, %v102
    %s104 = sld [smem:[#allocation6 + $0x180]]
    %v105 = vstv %s104
    %v106 = vmul.f32 %v105, %v81
    %v107 = vadd.f32 %v103, %v106
    %s108 = sld [smem:[#allocation6 + $0x200]]
    %v109 = vstv %s108
    %v110 = vmul.f32 %v109, %v83
    %v111 = vadd.f32 %v107, %v110
    %v112 = vmax.f32 %v111, 0.0
    %s113 = sld [smem:[#allocation9]]
    %v114 = vstv %s113
    %v115 = vmul.f32 %v114, %v112
    %v116 = vadd.f32 %v85, %v115
    %s117 = sld [smem:[#allocation9 + $0x1]]
    %v118 = vstv %s117
    %v119 = vmul.f32 %v118, %v112
    %v120 = vadd.f32 %v87, %v119
    %s121 = sld [smem:[#allocation9 + $0x2]]
    %v122 = vstv %s121
    %v123 = vmul.f32 %v122, %v112
    %v124 = vadd.f32 %v89, %v123
    %s125 = sld [smem:[#allocation7 + $0x1]]
    %v126 = vstv %s125
    %s127 = sld [smem:[#allocation6 + $0x1]]
    %v128 = vstv %s127
    %v129 = vmul.f32 %v128, %v75
    %v130 = vadd.f32 %v126, %v129
    %s131 = sld [smem:[#allocation6 + $0x81]]
    %v132 = vstv %s131
    %v133 = vmul.f32 %v132, %v77
    %v134 = vadd.f32 %v130, %v133
    %s135 = sld [smem:[#allocation6 + $0x101]]
    %v136 = vstv %s135
    %v137 = vmul.f32 %v136, %v79
    %v138 = vadd.f32 %v134, %v137
    %s139 = sld [smem:[#allocation6 + $0x181]]
    %v140 = vstv %s139
    %v141 = vmul.f32 %v140, %v81
    %v142 = vadd.f32 %v138, %v141
    %s143 = sld [smem:[#allocation6 + $0x201]]
    %v144 = vstv %s143
    %v145 = vmul.f32 %v144, %v83
    %v146 = vadd.f32 %v142, %v145
    %v147 = vmax.f32 %v146, 0.0
    %s148 = sld [smem:[#allocation9 + $0x80]]
    %v149 = vstv %s148
    %v150 = vmul.f32 %v149, %v147
    %v151 = vadd.f32 %v116, %v150
    %s152 = sld [smem:[#allocation9 + $0x81]]
    %v153 = vstv %s152
    %v154 = vmul.f32 %v153, %v147
    %v155 = vadd.f32 %v120, %v154
    %s156 = sld [smem:[#allocation9 + $0x82]]
    %v157 = vstv %s156
    %v158 = vmul.f32 %v157, %v147
    %v159 = vadd.f32 %v124, %v158
    %s160 = sld [smem:[#allocation7 + $0x2]]
    %v161 = vstv %s160
    %s162 = sld [smem:[#allocation6 + $0x2]]
    %v163 = vstv %s162
    %v164 = vmul.f32 %v163, %v75
    %v165 = vadd.f32 %v161, %v164
    %s166 = sld [smem:[#allocation6 + $0x82]]
    %v167 = vstv %s166
    %v168 = vmul.f32 %v167, %v77
    %v169 = vadd.f32 %v165, %v168
    %s170 = sld [smem:[#allocation6 + $0x102]]
    %v171 = vstv %s170
    %v172 = vmul.f32 %v171, %v79
    %v173 = vadd.f32 %v169, %v172
    %s174 = sld [smem:[#allocation6 + $0x182]]
    %v175 = vstv %s174
    %v176 = vmul.f32 %v175, %v81
    %v177 = vadd.f32 %v173, %v176
    %s178 = sld [smem:[#allocation6 + $0x202]]
    %v179 = vstv %s178
    %v180 = vmul.f32 %v179, %v83
    %v181 = vadd.f32 %v177, %v180
    %v182 = vmax.f32 %v181, 0.0
    %s183 = sld [smem:[#allocation9 + $0x100]]
    %v184 = vstv %s183
    %v185 = vmul.f32 %v184, %v182
    %v186 = vadd.f32 %v151, %v185
    %s187 = sld [smem:[#allocation9 + $0x101]]
    %v188 = vstv %s187
    %v189 = vmul.f32 %v188, %v182
    %v190 = vadd.f32 %v155, %v189
    %s191 = sld [smem:[#allocation9 + $0x102]]
    %v192 = vstv %s191
    %v193 = vmul.f32 %v192, %v182
    %v194 = vadd.f32 %v159, %v193
    %s195 = sld [smem:[#allocation7 + $0x3]]
    %v196 = vstv %s195
    %s197 = sld [smem:[#allocation6 + $0x3]]
    %v198 = vstv %s197
    %v199 = vmul.f32 %v198, %v75
    %v200 = vadd.f32 %v196, %v199
    %s201 = sld [smem:[#allocation6 + $0x83]]
    %v202 = vstv %s201
    %v203 = vmul.f32 %v202, %v77
    %v204 = vadd.f32 %v200, %v203
    %s205 = sld [smem:[#allocation6 + $0x103]]
    %v206 = vstv %s205
    %v207 = vmul.f32 %v206, %v79
    %v208 = vadd.f32 %v204, %v207
    %s209 = sld [smem:[#allocation6 + $0x183]]
    %v210 = vstv %s209
    %v211 = vmul.f32 %v210, %v81
    %v212 = vadd.f32 %v208, %v211
    %s213 = sld [smem:[#allocation6 + $0x203]]
    %v214 = vstv %s213
    %v215 = vmul.f32 %v214, %v83
    %v216 = vadd.f32 %v212, %v215
    %v217 = vmax.f32 %v216, 0.0
    %s218 = sld [smem:[#allocation9 + $0x180]]
    %v219 = vstv %s218
    %v220 = vmul.f32 %v219, %v217
    %v221 = vadd.f32 %v186, %v220
    %s222 = sld [smem:[#allocation9 + $0x181]]
    %v223 = vstv %s222
    %v224 = vmul.f32 %v223, %v217
    %v225 = vadd.f32 %v190, %v224
    %s226 = sld [smem:[#allocation9 + $0x182]]
    %v227 = vstv %s226
    %v228 = vmul.f32 %v227, %v217
    %v229 = vadd.f32 %v194, %v228
    %s230 = sld [smem:[#allocation7 + $0x4]]
    %v231 = vstv %s230
    %s232 = sld [smem:[#allocation6 + $0x4]]
    %v233 = vstv %s232
    %v234 = vmul.f32 %v233, %v75
    %v235 = vadd.f32 %v231, %v234
    %s236 = sld [smem:[#allocation6 + $0x84]]
    %v237 = vstv %s236
    %v238 = vmul.f32 %v237, %v77
    %v239 = vadd.f32 %v235, %v238
    %s240 = sld [smem:[#allocation6 + $0x104]]
    %v241 = vstv %s240
    %v242 = vmul.f32 %v241, %v79
    %v243 = vadd.f32 %v239, %v242
    %s244 = sld [smem:[#allocation6 + $0x184]]
    %v245 = vstv %s244
    %v246 = vmul.f32 %v245, %v81
    %v247 = vadd.f32 %v243, %v246
    %s248 = sld [smem:[#allocation6 + $0x204]]
    %v249 = vstv %s248
    %v250 = vmul.f32 %v249, %v83
    %v251 = vadd.f32 %v247, %v250
    %v252 = vmax.f32 %v251, 0.0
    %s253 = sld [smem:[#allocation9 + $0x200]]
    %v254 = vstv %s253
    %v255 = vmul.f32 %v254, %v252
    %v256 = vadd.f32 %v221, %v255
    %s257 = sld [smem:[#allocation9 + $0x201]]
    %v258 = vstv %s257
    %v259 = vmul.f32 %v258, %v252
    %v260 = vadd.f32 %v225, %v259
    %s261 = sld [smem:[#allocation9 + $0x202]]
    %v262 = vstv %s261
    %v263 = vmul.f32 %v262, %v252
    %v264 = vadd.f32 %v229, %v263
    %s265 = sld [smem:[#allocation7 + $0x5]]
    %v266 = vstv %s265
    %s267 = sld [smem:[#allocation6 + $0x5]]
    %v268 = vstv %s267
    %v269 = vmul.f32 %v268, %v75
    %v270 = vadd.f32 %v266, %v269
    %s271 = sld [smem:[#allocation6 + $0x85]]
    %v272 = vstv %s271
    %v273 = vmul.f32 %v272, %v77
    %v274 = vadd.f32 %v270, %v273
    %s275 = sld [smem:[#allocation6 + $0x105]]
    %v276 = vstv %s275
    %v277 = vmul.f32 %v276, %v79
    %v278 = vadd.f32 %v274, %v277
    %s279 = sld [smem:[#allocation6 + $0x185]]
    %v280 = vstv %s279
    %v281 = vmul.f32 %v280, %v81
    %v282 = vadd.f32 %v278, %v281
    %s283 = sld [smem:[#allocation6 + $0x205]]
    %v284 = vstv %s283
    %v285 = vmul.f32 %v284, %v83
    %v286 = vadd.f32 %v282, %v285
    %v287 = vmax.f32 %v286, 0.0
    %s288 = sld [smem:[#allocation9 + $0x280]]
    %v289 = vstv %s288
    %v290 = vmul.f32 %v289, %v287
    %v291 = vadd.f32 %v256, %v290
    %s292 = sld [smem:[#allocation9 + $0x281]]
    %v293 = vstv %s292
    %v294 = vmul.f32 %v293, %v287
    %v295 = vadd.f32 %v260, %v294
    %s296 = sld [smem:[#allocation9 + $0x282]]
    %v297 = vstv %s296
    %v298 = vmul.f32 %v297, %v287
    %v299 = vadd.f32 %v264, %v298
    %s300 = sld [smem:[#allocation7 + $0x6]]
    %v301 = vstv %s300
    %s302 = sld [smem:[#allocation6 + $0x6]]
    %v303 = vstv %s302
    %v304 = vmul.f32 %v303, %v75
    %v305 = vadd.f32 %v301, %v304
    %s306 = sld [smem:[#allocation6 + $0x86]]
    %v307 = vstv %s306
    %v308 = vmul.f32 %v307, %v77
    %v309 = vadd.f32 %v305, %v308
    %s310 = sld [smem:[#allocation6 + $0x106]]
    %v311 = vstv %s310
    %v312 = vmul.f32 %v311, %v79
    %v313 = vadd.f32 %v309, %v312
    %s314 = sld [smem:[#allocation6 + $0x186]]
    %v315 = vstv %s314
    %v316 = vmul.f32 %v315, %v81
    %v317 = vadd.f32 %v313, %v316
    %s318 = sld [smem:[#allocation6 + $0x206]]
    %v319 = vstv %s318
    %v320 = vmul.f32 %v319, %v83
    %v321 = vadd.f32 %v317, %v320
    %v322 = vmax.f32 %v321, 0.0
    %s323 = sld [smem:[#allocation9 + $0x300]]
    %v324 = vstv %s323
    %v325 = vmul.f32 %v324, %v322
    %v326 = vadd.f32 %v291, %v325
    %s327 = sld [smem:[#allocation9 + $0x301]]
    %v328 = vstv %s327
    %v329 = vmul.f32 %v328, %v322
    %v330 = vadd.f32 %v295, %v329
    %s331 = sld [smem:[#allocation9 + $0x302]]
    %v332 = vstv %s331
    %v333 = vmul.f32 %v332, %v322
    %v334 = vadd.f32 %v299, %v333
    %335 = vst [vmem:[#allocation12] sm:$0xff] %v326
    %s336 = scalar_lea.vmem [#allocation12], 8
    %337 = vst [vmem:[%s336] sm:$0xff] %v330
    %s338 = scalar_lea.vmem [#allocation12], 16
    %339 = vst [vmem:[%s338] sm:$0xff] %v334
    // Predicated region
    $region42: #{tpu_custom_call.1} parent=1 // pred_check
      _
    $region43: #{tpu_custom_call.1} parent=1 // pred_check_branch
      %341 = sbr.rel (0) target = $region45
    $region44: #{tpu_custom_call.1} parent=1 // pred_region
      %s343 = ssub.s32 384, 384
      %344 = vsyncadd [#allocation4], %s343
      %s345 = sshll.u32 [#allocation12], 4
      %s346 = int_to_ptr.vmem [resolvable:$true] %s345
      %351 = dma.vmem_to_hbm [thread:$0]  %s346, 384, %s5, [#allocation4], 128, 128, 8
    $region45: #{tpu_custom_call.1} parent=1 // pred_fallthru
      _
    // Predicated region
    $region46: #{tpu_custom_call.1} parent=1 // pred_check
      _
    $region47: #{tpu_custom_call.1} parent=1 // pred_check_branch
      %353 = sbr.rel (0) target = $region49
    $region48: #{tpu_custom_call.1} parent=1 // pred_region
      %354 = dma.done [#allocation4], 384
    $region49: #{tpu_custom_call.1} parent=1 // pred_fallthru
      _
    %355 = vsyncpa [#allocation3], 1
    %356 = vsyncpa [#allocation4], 1
    %357 = vsyncpa [#allocation5], 1
    %358 = vsyncpa [#allocation8], 1
    %359 = vsyncpa [#allocation11], 1

</llo_original>
